<compile_context>
chip_gen: v6e
topology: v6e:2x2x1
jax: 0.10.0
libtpu: 0.0.40
codegen_flags: <defaults>
</compile_context>

<pallas_src>
import jax
import jax.numpy as jnp
from jax.experimental import pallas as pl
from jax.experimental.pallas import tpu as pltpu


_TILE_BYTES = 2 * 1024 * 1024          # ~2 MiB per block; 2 bufs x (in+out) = 8 MiB VMEM
_COL_CHOICES = (2048, 1024, 512, 256, 128)


def _sigmoid_kernel(x_ref, o_ref):
    # sigmoid(x) = 0.5 * tanh(0.5*x) + 0.5 -> one EUP op, no overflow, exact.
    x = x_ref[...].astype(jnp.float32)        # f32 compute (v5e has no bf16 VPU/EUP)
    o_ref[...] = (0.5 * jnp.tanh(0.5 * x) + 0.5).astype(o_ref.dtype)


def _round_up(v, m):
    return ((v + m - 1) // m) * m


@jax.jit
def act_sigmoid(x: jax.Array) -> jax.Array:
    """Elementwise sigmoid via a tiled, pipelined Pallas kernel on a lane-dense slab."""
    orig_shape = x.shape
    dtype = x.dtype
    n = int(x.size)
    if n == 0:                                # guard: empty input
        return x

    itemsize = jnp.dtype(dtype).itemsize
    sub = 8 * max(1, 4 // itemsize)           # sublane granularity: f32->8, bf16->16, i8->32
    max_cols = _TILE_BYTES // (sub * itemsize)

    padded = False
    last = orig_shape[-1] if x.ndim >= 1 else 1

    if x.ndim >= 2 and last % 128 == 0 and last <= max_cols:
        # Fast path: last dim already lane-aligned -> collapse leading dims.
        # No pad, no trailing slice, reshape is free.
        cols = last
        rows = n // cols
        x2 = x.reshape(rows, cols)
    else:
        # Flat path: find a lane-aligned width that divides n exactly.
        cols = next((c for c in _COL_CHOICES if n % c == 0), 0)
        if cols:
            rows = n // cols
            x2 = x.reshape(rows, cols)
        else:
            # Unavoidable (n not a multiple of 128): minimal pad to 128 lanes.
            cols = 128
            rows = pl.cdiv(n, cols)
            x2 = jnp.pad(x.reshape(-1), (0, rows * cols - n)).reshape(rows, cols)
            padded = True

    # Row tile: biggest block within the VMEM budget; for anything larger than
    # one sublane group, cap tm so the grid has >= 2 steps (lets v7x's two
    # TensorCores both stream; harmless on v5e/v6e).
    tm_budget = max(sub, (_TILE_BYTES // (cols * itemsize)) // sub * sub)
    if rows <= sub:
        tm = rows                             # block dim == full array dim (allowed)
    else:
        tm = min(tm_budget, max(sub, _round_up(pl.cdiv(rows, 2), sub)))
    grid = (pl.cdiv(rows, tm),)               # ragged last block is masked by Pallas

    y2 = pl.pallas_call(
        _sigmoid_kernel,
        out_shape=jax.ShapeDtypeStruct((rows, cols), dtype),
        grid=grid,
        in_specs=[pl.BlockSpec((tm, cols), lambda i: (i, 0))],
        out_specs=pl.BlockSpec((tm, cols), lambda i: (i, 0)),
        compiler_params=pltpu.CompilerParams(
            dimension_semantics=("parallel",)),
    )(x2)

    if padded:
        return y2.reshape(-1)[:n].reshape(orig_shape)
    return y2.reshape(orig_shape)


if __name__ == "__main__":
    key = jax.random.PRNGKey(0)

    def ref(v):
        return 1.0 / (1.0 + jnp.exp(-v.astype(jnp.float32)))

    # Exact values from the PyTorch snippet: x = [[1., 2., 3.]]  (pad path).
    x_small = jnp.array([[1.0, 2.0, 3.0]], dtype=jnp.float32)
    y_small = jax.block_until_ready(act_sigmoid(x_small))
    assert y_small.shape == x_small.shape
    assert jnp.allclose(y_small, ref(x_small), atol=1e-5, rtol=1e-5), "small-input mismatch"

    # Lane-aligned fast path (no pad, no slice): (2, 4, 128) f32.
    x1 = jax.random.normal(key, (2, 4, 128), dtype=jnp.float32)
    y1 = jax.block_until_ready(act_sigmoid(x1))
    assert jnp.allclose(y1, ref(x1), atol=1e-5, rtol=1e-5), "f32 fast-path mismatch"

    # Flat no-pad path: 1-D length that is a multiple of 128.
    x2 = jax.random.normal(jax.random.PRNGKey(1), (384,), dtype=jnp.float32)
    y2 = jax.block_until_ready(act_sigmoid(x2))
    assert jnp.allclose(y2, ref(x2), atol=1e-5, rtol=1e-5), "f32 flat-path mismatch"

    # bf16 path (f32 compute inside the kernel, cast back at the store).
    x3 = jax.random.normal(jax.random.PRNGKey(2), (16, 128)).astype(jnp.bfloat16)
    y3 = jax.block_until_ready(act_sigmoid(x3))
    assert jnp.allclose(y3.astype(jnp.float32), ref(x3), atol=1e-2, rtol=1e-2), "bf16 mismatch"

    print("KERNEL_OK")
</pallas_src>

<mosaic_0001>
module attributes {stable_mosaic.version = 11 : i64} {
  func.func @_sigmoid_kernel(%arg0: i32, %arg1: memref<1x128xf32, #tpu.memory_space<vmem>>, %arg2: memref<1x128xf32, #tpu.memory_space<vmem>>) attributes {dimension_semantics = [#tpu.dimension_semantics<parallel>], iteration_bounds = array<i64: 1>, scalar_prefetch = 0 : i64, scratch_operands = 0 : i64, tpu.core_type = #tpu.core_type<tc>, window_params = [{transform_indices = @transform_0, window_bounds = array<i64: 1, 128>}, {transform_indices = @transform_1, window_bounds = array<i64: 1, 128>}]} {
    %c0 = arith.constant 0 : index
    %c0_0 = arith.constant 0 : index
    %0 = vector.load %arg1[%c0, %c0_0] : memref<1x128xf32, #tpu.memory_space<vmem>>, vector<1x128xf32>
    %cst = arith.constant 5.000000e-01 : f32
    %1 = vector.broadcast %cst : f32 to vector<1x128xf32>
    %2 = arith.mulf %1, %0 : vector<1x128xf32>
    %3 = math.tanh %2 : vector<1x128xf32>
    %cst_1 = arith.constant 5.000000e-01 : f32
    %4 = vector.broadcast %cst_1 : f32 to vector<1x128xf32>
    %5 = arith.mulf %4, %3 : vector<1x128xf32>
    %cst_2 = arith.constant 5.000000e-01 : f32
    %6 = vector.broadcast %cst_2 : f32 to vector<1x128xf32>
    %7 = arith.addf %5, %6 : vector<1x128xf32>
    %c0_3 = arith.constant 0 : index
    %c0_4 = arith.constant 0 : index
    %8 = vector.load %arg2[%c0_3, %c0_4] : memref<1x128xf32, #tpu.memory_space<vmem>>, vector<1x128xf32>
    tpu.vector_store %arg2[%c0_3, %c0_4], %7 {strides = array<i32>} : memref<1x128xf32, #tpu.memory_space<vmem>>, vector<1x128xf32>,
    return
  }
  func.func @transform_0(%arg0: i32) -> (i32, i32) {
    %c0_i32 = arith.constant 0 : i32
    %c0_i32_0 = arith.constant 0 : i32
    return %arg0, %c0_i32 : i32, i32
  }
  func.func @transform_1(%arg0: i32) -> (i32, i32) {
    %c0_i32 = arith.constant 0 : i32
    %c0_i32_0 = arith.constant 0 : i32
    return %arg0, %c0_i32 : i32, i32
  }
}

</mosaic_0001>

<llo_original>
// kernel: act_sigmoid.1
$region0: #{act_sigmoid.1}
  #allocation0 [shape = 'u32[]', space=smem, size = 0x4, offset = 0x4, fixed_abs, tag = 'smem constant byte address 0x4 - core index']
  #allocation1 [shape = 'u32[144,128]{1,0:T(1,128)}', space=vmem, size = 0x12000, scoped, tag = 'internal scratch']
  %s0 = inlined_call_operand.vmem [shape: f32[1,128], index: 0, kind: input, shape index: {}]
  %s1 = inlined_call_operand.hbm [shape: f32[1,128], index: 1, kind: output, shape index: {}]
  %s2 = sld [smem:[#allocation0]]
  $region14: #{act_sigmoid.1} parent=0
    _
  %s4 = ssub.s32 1, %s2
  %s5 = scalar_select 0, %s4, %s2
  $region1: #{act_sigmoid.1} parent=0
    #allocation2 [shape = 'u8[512]{0}', space=vmem, size = 0x400, scoped, tag = 'output window, operand 0, single buffered']
    #allocation3 [shape = 's32[1]{0}', space=sflag, size = 0x4, scoped, tag = 'scoped memory for act_sigmoid.1']
    %6 = vsyncpa [#allocation3], 0
    // Predicated region
    $region2: #{act_sigmoid.1} parent=1 // pred_check
      _
    $region3: #{act_sigmoid.1} parent=1 // pred_check_branch
      %8 = sbr.rel (0) target = $region5
    $region4: #{act_sigmoid.1} parent=1 // pred_region
      _
    $region5: #{act_sigmoid.1} parent=1 // pred_fallthru
      _
    %v9 = vld [vmem:[%s0] sm:$0x1]
    %v10 = vmul.f32 %v9, 0.5
    %v11 = vtanh.pop %v10
    %v12 = vmul.f32 %v11, 0.5
    %v13 = vadd.f32 %v12, 0.5
    %14 = vst [vmem:[#allocation2] sm:$0x1] %v13
    // Predicated region
    $region6: #{act_sigmoid.1} parent=1 // pred_check
      _
    $region7: #{act_sigmoid.1} parent=1 // pred_check_branch
      %16 = sbr.rel (0) target = $region9
    $region8: #{act_sigmoid.1} parent=1 // pred_region
      %s18 = ssub.s32 16, 16
      %19 = vsyncadd [#allocation3], %s18
      %s21 = sshll.u32 [#allocation2], 4
      %s22 = int_to_ptr.vmem [resolvable:$true] %s21
      %24 = dma.vmem_to_hbm [thread:$0]  %s22, 16, %s1, [#allocation3]
    $region9: #{act_sigmoid.1} parent=1 // pred_fallthru
      _
    // Predicated region
    $region10: #{act_sigmoid.1} parent=1 // pred_check
      _
    $region11: #{act_sigmoid.1} parent=1 // pred_check_branch
      %26 = sbr.rel (0) target = $region13
    $region12: #{act_sigmoid.1} parent=1 // pred_region
      %27 = dma.done [#allocation3], 16
    $region13: #{act_sigmoid.1} parent=1 // pred_fallthru
      _
    %28 = vsyncpa [#allocation3], 1

</llo_original>
